<compile_context>
chip_gen: v7x
topology: tpu7x:2x2x1
jax: 0.10.0
libtpu: 0.0.40
codegen_flags: <defaults>
</compile_context>

<pallas_src>
import functools

import jax
import jax.numpy as jnp
from jax.experimental import pallas as pl
from jax.experimental.pallas import tpu as pltpu

_LANE = 128
_MAX_TILE_ROWS = 4096   # 4096*128*4B = 2 MiB per f32 input block (1 MiB bf16)
_NUM_SPLITS = 2         # leading "parallel" axis: 2 TCs on v7x, loop elsewhere


def _mae_kernel(x_ref, t_ref, o_ref, *, rows_total, needs_mask):
    i = pl.program_id(1)

    @pl.when(i == 0)
    def _():
        o_ref[...] = jnp.zeros_like(o_ref)

    x = x_ref[...].astype(jnp.float32)
    t = t_ref[...].astype(jnp.float32)
    ad = jnp.abs(x - t)

    if needs_mask:
        # Zero rows that fall past the end of the slab (ragged last block or a
        # clamped duplicate block on the second core).
        c = pl.program_id(0)
        tile_rows = x_ref.shape[0]
        base = (c * pl.num_programs(1) + i) * tile_rows
        row_ids = base + jax.lax.broadcasted_iota(jnp.int32, ad.shape, 0)
        ad = jnp.where(row_ids < rows_total, ad, 0.0)

    # Per-(sublane, lane) partial sums; stays on the VPU.  Cross-lane reduce
    # to a scalar is deferred to the wrapper.
    o_ref[...] += jnp.sum(ad.reshape(-1, 8, _LANE), axis=0)


def _round_down(x: int, m: int) -> int:
    return (x // m) * m


def mae_loss(x: jax.Array, target: jax.Array, meta=None) -> jax.Array:
    """Mean absolute error: mean(|x - target|) over all elements."""
    assert x.shape == target.shape, (x.shape, target.shape)
    assert x.dtype == target.dtype, (x.dtype, target.dtype)
    total = x.size

    xf = x.reshape(-1)
    tf = target.reshape(-1)

    # Sublane packing of the native dtype: f32 -> 8, bf16 -> 16, int8/fp8 -> 32.
    itemsize = jnp.dtype(x.dtype).itemsize
    sublane = max(8, 32 // max(itemsize, 1))
    chunk = sublane * _LANE

    bulk = _round_down(total, chunk)
    rows = bulk // _LANE  # guaranteed multiple of `sublane` (>= 8)

    # Tail (< chunk elements): plain JAX; empty in the common aligned case.
    if bulk < total:
        tail_sum = jnp.sum(
            jnp.abs(xf[bulk:].astype(jnp.float32) - tf[bulk:].astype(jnp.float32))
        )
    else:
        tail_sum = jnp.float32(0.0)

    if rows == 0:
        return tail_sum / jnp.float32(total)

    if bulk == total:
        x2 = xf.reshape(rows, _LANE)   # pure reshape, no copy
        t2 = tf.reshape(rows, _LANE)
    else:
        x2 = xf[:bulk].reshape(rows, _LANE)
        t2 = tf[:bulk].reshape(rows, _LANE)

    tile_rows = min(rows, _MAX_TILE_ROWS)        # multiple of 8 by construction
    nblocks = pl.cdiv(rows, tile_rows)
    splits = min(_NUM_SPLITS, nblocks)
    steps = pl.cdiv(nblocks, splits)
    last_block = nblocks - 1
    needs_mask = (splits * steps * tile_rows) != rows

    def in_map(c, i):
        # Clamp so the second core's overhang steps re-read a valid block;
        # the in-kernel mask zeroes their contribution.
        return (jnp.minimum(c * steps + i, last_block), 0)

    kernel = functools.partial(
        _mae_kernel, rows_total=rows, needs_mask=needs_mask
    )

    in_bytes = 2 * rows * _LANE * itemsize
    out_bytes = splits * 8 * _LANE * 4

    partials = pl.pallas_call(
        kernel,
        out_shape=jax.ShapeDtypeStruct((splits * 8, _LANE), jnp.float32),
        grid_spec=pltpu.PrefetchScalarGridSpec(
            num_scalar_prefetch=0,
            grid=(splits, steps),
            in_specs=[
                pl.BlockSpec((tile_rows, _LANE), in_map),
                pl.BlockSpec((tile_rows, _LANE), in_map),
            ],
            out_specs=pl.BlockSpec((8, _LANE), lambda c, i: (c, 0)),
        ),
        compiler_params=pltpu.CompilerParams(
            dimension_semantics=("parallel", "arbitrary"),
            vmem_limit_bytes=32 * 1024 * 1024,
        ),
        cost_estimate=pl.CostEstimate(
            flops=3 * bulk,
            transcendentals=0,
            bytes_accessed=in_bytes + out_bytes,
        ),
    )(x2, t2)

    return (jnp.sum(partials) + tail_sum) / jnp.float32(total)


if __name__ == "__main__":
    key = jax.random.PRNGKey(0)
    kx, kt = jax.random.split(key)
    # Small NCHW shapes consistent with an image-regression loss.
    x = jax.random.normal(kx, (2, 4, 16, 16), dtype=jnp.float32)
    target = jax.random.normal(kt, (2, 4, 16, 16), dtype=jnp.float32)
    meta = {}  # unused by the loss

    loss = mae_loss(x, target, meta)
    jax.block_until_ready(loss)
    ref = jnp.mean(jnp.abs(x - target))
    assert jnp.allclose(loss, ref, rtol=1e-5, atol=1e-6), (loss, ref)

    # Extra checks: ragged size with a JAX-side tail, a multi-block two-way
    # split with an in-kernel masked boundary block, and a bf16 input.
    extra_cases = (
        ((3, 5, 7, 11), jnp.float32),    # tail path (131 trailing elements)
        ((4, 16, 96, 96), jnp.float32),  # 2 blocks, 2-way split, masked edge
        ((2, 8, 64, 48), jnp.bfloat16),  # native-dtype (bf16) streaming
    )
    for idx, (shape, dtype) in enumerate(extra_cases):
        kxi, kti = jax.random.split(jax.random.fold_in(key, idx + 1))
        xi = jax.random.normal(kxi, shape, dtype=jnp.float32).astype(dtype)
        ti = jax.random.normal(kti, shape, dtype=jnp.float32).astype(dtype)
        got = mae_loss(xi, ti, meta)
        jax.block_until_ready(got)
        want = jnp.mean(
            jnp.abs(xi.astype(jnp.float32) - ti.astype(jnp.float32))
        )
        assert jnp.allclose(got, want, rtol=1e-4, atol=1e-5), (shape, got, want)

    print("KERNEL_OK")
</pallas_src>

<mosaic_0001>
module attributes {stable_mosaic.version = 11 : i64} {
  func.func @_mae_kernel(%arg0: i32, %arg1: i32, %arg2: memref<16x128xf32, #tpu.memory_space<vmem>>, %arg3: memref<16x128xf32, #tpu.memory_space<vmem>>, %arg4: memref<8x128xf32, #tpu.memory_space<vmem>>) attributes {dimension_semantics = [#tpu.dimension_semantics<parallel>, #tpu.dimension_semantics<arbitrary>], iteration_bounds = array<i64: 1, 1>, scalar_prefetch = 0 : i64, scratch_operands = 0 : i64, tpu.core_type = #tpu.core_type<tc>, window_params = [{transform_indices = @transform_0, window_bounds = array<i64: 16, 128>}, {transform_indices = @transform_1, window_bounds = array<i64: 16, 128>}, {transform_indices = @transform_2, window_bounds = array<i64: 8, 128>}]} {
    %c0_i32 = arith.constant 0 : i32
    %0 = arith.cmpi eq, %arg1, %c0_i32 : i32
    %1 = arith.extui %0 : i1 to i32
    %c0_i32_0 = arith.constant 0 : i32
    %2 = arith.cmpi ne, %1, %c0_i32_0 : i32
    scf.if %2 {
      %cst_8 = arith.constant 0.000000e+00 : f32
      %12 = vector.broadcast %cst_8 : f32 to vector<8x128xf32>
      %c0_9 = arith.constant 0 : index
      %c0_10 = arith.constant 0 : index
      %13 = vector.load %arg4[%c0_9, %c0_10] : memref<8x128xf32, #tpu.memory_space<vmem>>, vector<8x128xf32>
      tpu.vector_store %arg4[%c0_9, %c0_10], %12 {strides = array<i32>} : memref<8x128xf32, #tpu.memory_space<vmem>>, vector<8x128xf32>,
    } else {
    }
    %c0 = arith.constant 0 : index
    %c0_1 = arith.constant 0 : index
    %3 = vector.load %arg2[%c0, %c0_1] : memref<16x128xf32, #tpu.memory_space<vmem>>, vector<16x128xf32>
    %c0_2 = arith.constant 0 : index
    %c0_3 = arith.constant 0 : index
    %4 = vector.load %arg3[%c0_2, %c0_3] : memref<16x128xf32, #tpu.memory_space<vmem>>, vector<16x128xf32>
    %5 = arith.subf %3, %4 : vector<16x128xf32>
    %6 = math.absf %5 : vector<16x128xf32>
    %c0_4 = arith.constant 0 : index
    %c0_5 = arith.constant 0 : index
    %7 = vector.load %arg4[%c0_4, %c0_5] : memref<8x128xf32, #tpu.memory_space<vmem>>, vector<8x128xf32>
    %8 = vector.shape_cast %6 : vector<16x128xf32> to vector<2x8x128xf32>
    %cst = arith.constant dense<0.000000e+00> : vector<8x128xf32>
    %9 = vector.multi_reduction <add>, %8, %cst [0] : vector<2x8x128xf32> to vector<8x128xf32>
    %10 = arith.addf %7, %9 : vector<8x128xf32>
    %c0_6 = arith.constant 0 : index
    %c0_7 = arith.constant 0 : index
    %11 = vector.load %arg4[%c0_6, %c0_7] : memref<8x128xf32, #tpu.memory_space<vmem>>, vector<8x128xf32>
    tpu.vector_store %arg4[%c0_6, %c0_7], %10 {strides = array<i32>} : memref<8x128xf32, #tpu.memory_space<vmem>>, vector<8x128xf32>,
    return
  }
  func.func @transform_0(%arg0: i32, %arg1: i32) -> (i32, i32) {
    %c1_i32 = arith.constant 1 : i32
    %0 = arith.muli %arg0, %c1_i32 : i32
    %1 = arith.addi %0, %arg1 : i32
    %c0_i32 = arith.constant 0 : i32
    %2 = arith.minsi %1, %c0_i32 : i32
    %c0_i32_0 = arith.constant 0 : i32
    %c0_i32_1 = arith.constant 0 : i32
    return %2, %c0_i32_0 : i32, i32
  }
  func.func @transform_1(%arg0: i32, %arg1: i32) -> (i32, i32) {
    %c1_i32 = arith.constant 1 : i32
    %0 = arith.muli %arg0, %c1_i32 : i32
    %1 = arith.addi %0, %arg1 : i32
    %c0_i32 = arith.constant 0 : i32
    %2 = arith.minsi %1, %c0_i32 : i32
    %c0_i32_0 = arith.constant 0 : i32
    %c0_i32_1 = arith.constant 0 : i32
    return %2, %c0_i32_0 : i32, i32
  }
  func.func @transform_2(%arg0: i32, %arg1: i32) -> (i32, i32) {
    %c0_i32 = arith.constant 0 : i32
    %c0_i32_0 = arith.constant 0 : i32
    return %arg0, %c0_i32 : i32, i32
  }
}

</mosaic_0001>

<llo_original>
// kernel: tpu_custom_call.1
$region0: #{tpu_custom_call.1}
  #allocation0 [shape = 'u32[]', space=smem, size = 0x4, offset = 0x4, fixed_abs, tag = 'smem constant byte address 0x4 - core index']
  #allocation1 [shape = 'u32[144,128]{1,0:T(1,128)}', space=vmem, size = 0x12000, scoped, tag = 'internal scratch']
  %s0 = inlined_call_operand.hbm [shape: f32[16,128], index: 0, kind: input, shape index: {}]
  %s1 = inlined_call_operand.hbm [shape: f32[16,128], index: 1, kind: input, shape index: {}]
  %s2 = inlined_call_operand.hbm [shape: f32[8,128], index: 2, kind: output, shape index: {}]
  %s3 = sld [smem:[#allocation0]]
  $region30: #{tpu_custom_call.1} parent=0
    _
  %s5 = ssub.s32 1, %s3
  %s6 = scalar_select 0, %s5, %s3
  $region1: #{tpu_custom_call.1} parent=0
    #allocation2 [shape = 'u8[8192]{0}', space=vmem, size = 0x2000, scoped, tag = 'input window, operand 0, single buffered']
    #allocation3 [shape = 's32[1]{0}', space=sflag, size = 0x4, scoped, tag = 'scoped memory for tpu_custom_call.1']
    #allocation4 [shape = 's32[1]{0}', space=sflag, size = 0x4, scoped, tag = 'scoped memory for tpu_custom_call.1']
    #allocation5 [shape = 'u8[8192]{0}', space=vmem, size = 0x2000, scoped, tag = 'input window, operand 1, single buffered']
    #allocation6 [shape = 's32[1]{0}', space=sflag, size = 0x4, scoped, tag = 'scoped memory for tpu_custom_call.1']
    #allocation7 [shape = 'u8[4096]{0}', space=vmem, size = 0x1000, scoped, tag = 'output window, operand 0, single buffered']
    %7 = vsyncpa [#allocation3], 0
    %8 = vsyncpa [#allocation6], 0
    %9 = vsyncpa [#allocation4], 0
    // Predicated region
    $region2: #{tpu_custom_call.1} parent=1 // pred_check
      _
    $region3: #{tpu_custom_call.1} parent=1 // pred_check_branch
      %11 = sbr.rel (0) target = $region5
    $region4: #{tpu_custom_call.1} parent=1 // pred_region
      %s12 = sadd.s32 0, 0
      %p13 = scmp.lt.s32.totalorder %s12, 0
      %s14 = scalar_select %p13, %s12, 0
      %s15 = smul.u32 2, %s14
      %s17 = ssub.s32 256, 256
      %18 = vsyncadd [#allocation3], %s17
      %s19 = smul.addr %s15, 128
      %s20 = scalar_lea.hbm %s0, %s19
      %s21 = sshll.u32 [#allocation2], 4
      %s22 = int_to_ptr.vmem [resolvable:$true] %s21
      %27 = dma.hbm_to_vmem [thread:$0]  %s20, 256, %s22, [#allocation3], 128, 128, 8
    $region5: #{tpu_custom_call.1} parent=1 // pred_fallthru
      _
    // Predicated region
    $region6: #{tpu_custom_call.1} parent=1 // pred_check
      _
    $region7: #{tpu_custom_call.1} parent=1 // pred_check_branch
      %29 = sbr.rel (0) target = $region9
    $region8: #{tpu_custom_call.1} parent=1 // pred_region
      %s30 = sadd.s32 0, 0
      %p31 = scmp.lt.s32.totalorder %s30, 0
      %s32 = scalar_select %p31, %s30, 0
      %s33 = smul.u32 2, %s32
      %s35 = ssub.s32 256, 256
      %36 = vsyncadd [#allocation6], %s35
      %s37 = smul.addr %s33, 128
      %s38 = scalar_lea.hbm %s1, %s37
      %s39 = sshll.u32 [#allocation5], 4
      %s40 = int_to_ptr.vmem [resolvable:$true] %s39
      %45 = dma.hbm_to_vmem [thread:$0]  %s38, 256, %s40, [#allocation6], 128, 128, 8
    $region9: #{tpu_custom_call.1} parent=1 // pred_fallthru
      _
    // Predicated region
    $region10: #{tpu_custom_call.1} parent=1 // pred_check
      _
    $region11: #{tpu_custom_call.1} parent=1 // pred_check_branch
      %47 = sbr.rel (0) target = $region13
    $region12: #{tpu_custom_call.1} parent=1 // pred_region
      %48 = dma.done [#allocation3], 256
    $region13: #{tpu_custom_call.1} parent=1 // pred_fallthru
      _
    // Predicated region
    $region14: #{tpu_custom_call.1} parent=1 // pred_check
      _
    $region15: #{tpu_custom_call.1} parent=1 // pred_check_branch
      %50 = sbr.rel (0) target = $region17
    $region16: #{tpu_custom_call.1} parent=1 // pred_region
      %51 = dma.done [#allocation6], 256
    $region17: #{tpu_custom_call.1} parent=1 // pred_fallthru
      _
    %s52 = sadd.s32 0, 0
    %p53 = scmp.lt.s32.totalorder %s52, 0
    %s54 = scalar_select %p53, %s52, 0
    %s55 = smul.u32 2, %s54
    %s56 = sadd.s32 0, 0
    %p57 = scmp.lt.s32.totalorder %s56, 0
    %s58 = scalar_select %p57, %s56, 0
    %s59 = smul.u32 2, %s58
    %p60 = scmp.eq.s32.totalorder 0, 0
    // Predicated region
    $region18: #{tpu_custom_call.1} parent=1 // pred_check
      %p61 = pneg %p60
    $region19: #{tpu_custom_call.1} parent=1 // pred_check_branch
      %63 = sbr.rel (%p61) target = $region21
    $region20: #{tpu_custom_call.1} parent=1 // pred_region
      %64 = vst [vmem:[#allocation7] sm:$0xff] 0.0
    $region21: #{tpu_custom_call.1} parent=1 // pred_fallthru
      _
    %v65 = vld [vmem:[#allocation2] sm:$0xff]
    %v66 = vld [vmem:[#allocation2 + $0x8] sm:$0xff]
    %v67 = vld [vmem:[#allocation5] sm:$0xff]
    %v68 = vld [vmem:[#allocation5 + $0x8] sm:$0xff]
    %v69 = vsub.f32 %v65, %v67
    %v70 = vsub.f32 %v66, %v68
    %v71 = vand.u32 2147483647, %v69
    %v72 = vand.u32 2147483647, %v70
    %v73 = vld [vmem:[#allocation7] sm:$0xff]
    %v74 = vadd.f32 %v71, %v72
    %v75 = vadd.f32 %v73, %v74
    %76 = vst [vmem:[#allocation7] sm:$0xff] %v75
    // Predicated region
    $region22: #{tpu_custom_call.1} parent=1 // pred_check
      _
    $region23: #{tpu_custom_call.1} parent=1 // pred_check_branch
      %78 = sbr.rel (0) target = $region25
    $region24: #{tpu_custom_call.1} parent=1 // pred_region
      %s80 = ssub.s32 128, 128
      %81 = vsyncadd [#allocation4], %s80
      %s83 = sshll.u32 [#allocation7], 4
      %s84 = int_to_ptr.vmem [resolvable:$true] %s83
      %86 = dma.vmem_to_hbm [thread:$0]  %s84, 128, %s2, [#allocation4]
    $region25: #{tpu_custom_call.1} parent=1 // pred_fallthru
      _
    // Predicated region
    $region26: #{tpu_custom_call.1} parent=1 // pred_check
      _
    $region27: #{tpu_custom_call.1} parent=1 // pred_check_branch
      %88 = sbr.rel (0) target = $region29
    $region28: #{tpu_custom_call.1} parent=1 // pred_region
      %89 = dma.done [#allocation4], 128
    $region29: #{tpu_custom_call.1} parent=1 // pred_fallthru
      _
    %90 = vsyncpa [#allocation3], 1
    %91 = vsyncpa [#allocation6], 1
    %92 = vsyncpa [#allocation4], 1

</llo_original>
